<compile_context>
chip_gen: v5e
topology: v5e:2x2
jax: 0.10.0
libtpu: 0.0.40
codegen_flags: <defaults>
</compile_context>

<pallas_src>
import functools

import jax
import jax.numpy as jnp
from jax.experimental import pallas as pl
from jax.experimental.pallas import tpu as pltpu


def _rmsnorm_kernel(x_ref, w_ref, o_ref, *, eps, inv_hidden):
    # x_ref: (tile_rows, hidden), w_ref: (1, hidden)
    # First read: only feeds the reduction; the f32 copy is dead afterwards.
    x_sq = x_ref[...].astype(jnp.float32)
    var = jnp.sum(x_sq * x_sq, axis=-1, keepdims=True) * inv_hidden  # (tr, 1)
    inv = jax.lax.rsqrt(var + eps)                                   # EUP rsqrt
    w = w_ref[...].astype(jnp.float32)                               # (1, hidden)
    # Second read: normalize + scale in f32, cast last (matches the PyTorch
    # module, which keeps hidden_states f32 through the weight multiply and
    # casts the product back to the input dtype only at the end).
    o_ref[...] = (w * (x_ref[...].astype(jnp.float32) * inv)).astype(o_ref.dtype)


def _vmem_capacity_bytes() -> int:
    try:
        info = pltpu.get_tpu_info()
        cap = getattr(info, "vmem_capacity_bytes", None)
        if cap:
            return int(cap)
    except Exception:
        pass
    return 128 << 20  # v5e/v6e physical VMEM per TC


def rmsnorm(hidden_states: jax.Array, weight: jax.Array, eps: float = 1e-6,
            *, tile_rows: int | None = None) -> jax.Array:
    """Pallas RMSNorm over the last axis of `hidden_states`.

    hidden_states: (..., hidden)
    weight:        (hidden,)
    """
    orig_shape = hidden_states.shape
    orig_dtype = hidden_states.dtype
    hidden = orig_shape[-1]

    x2d = hidden_states.reshape(-1, hidden)
    rows = x2d.shape[0]
    w2d = weight.reshape(1, hidden)

    itemsize = jnp.dtype(orig_dtype).itemsize
    # Sublane packing: 8 rows per vreg for 4-byte dtypes, 16 for 2-byte,
    # 32 for 1-byte.
    packing = 8 * max(1, 4 // max(itemsize, 1))

    vmem_cap = _vmem_capacity_bytes()
    # Leave ~25% headroom under physical VMEM for Mosaic internal scratch and
    # the pipeline buffers it adds on top of our estimate.
    vmem_budget_cap = int(0.75 * vmem_cap)

    if tile_rows is None:
        # v7x (64 MiB VMEM, ~3.2 TB/s): bigger tile to amortize per-step
        # overhead.  v5e/v6e (128 MiB, <=1.4 TB/s): 4 MiB is already >=94% of
        # the HBM roofline.
        target_in_bytes = (8 << 20) if vmem_cap <= (80 << 20) else (4 << 20)
        tile_rows = target_in_bytes // max(hidden * itemsize, 1)
        tile_rows = int(max(packing, min(tile_rows, 16384)))

    # Round to the dtype's sublane packing.
    tr = max(packing, (int(tile_rows) // packing) * packing)
    if tr >= rows:
        tr = rows  # full-extent block is always legal, regardless of packing

    def _budget(t):
        # Double-buffered input + output blocks, one f32 working tile, the
        # resident weight row, plus slack.
        block_bytes = t * hidden * itemsize
        f32_tmp = t * hidden * 4
        return 2 * (2 * block_bytes) + 2 * f32_tmp + 2 * hidden * 4 + (2 << 20)

    # Shrink the tile if the estimated budget would exceed the headroom cap.
    while tr > packing and _budget(tr) > vmem_budget_cap:
        tr = max(packing, ((tr // 2) // packing) * packing)

    grid = (pl.cdiv(rows, tr),)  # ragged last block handled by Pallas

    vmem_limit = int(min(max(_budget(tr), 8 << 20), vmem_budget_cap))

    out = pl.pallas_call(
        functools.partial(_rmsnorm_kernel, eps=float(eps), inv_hidden=1.0 / hidden),
        out_shape=jax.ShapeDtypeStruct((rows, hidden), orig_dtype),
        grid_spec=pltpu.PrefetchScalarGridSpec(
            num_scalar_prefetch=0,
            grid=grid,
            in_specs=[
                pl.BlockSpec((tr, hidden), lambda i: (i, 0)),
                pl.BlockSpec((1, hidden), lambda i: (0, 0)),
            ],
            out_specs=pl.BlockSpec((tr, hidden), lambda i: (i, 0)),
        ),
        compiler_params=pltpu.CompilerParams(
            dimension_semantics=("parallel",),   # shards rows across TCs on v7x
            vmem_limit_bytes=vmem_limit,
        ),
    )(x2d, w2d)

    return out.reshape(orig_shape)


def rmsnorm_ref(hidden_states, weight, eps=1e-6):
    """Pure-JAX reference mirroring the PyTorch forward exactly."""
    input_dtype = hidden_states.dtype
    x = hidden_states.astype(jnp.float32)
    variance = jnp.mean(x * x, axis=-1, keepdims=True)
    x = x * jax.lax.rsqrt(variance + eps)
    return (weight.astype(jnp.float32) * x).astype(input_dtype)


if __name__ == "__main__":
    key = jax.random.PRNGKey(0)
    kx, kw, kx2, kx3, kw3 = jax.random.split(key, 5)

    # Small shapes consistent with the module: (batch, seq, hidden).
    batch, seq, hidden = 2, 8, 256
    eps = 1e-6

    x = jax.random.normal(kx, (batch, seq, hidden), dtype=jnp.float32)
    # Module init is ones(hidden); use a perturbed deterministic weight so the
    # weight-multiply path is actually exercised by the check.
    weight = 1.0 + 0.1 * jax.random.normal(kw, (hidden,), dtype=jnp.float32)

    out = jax.block_until_ready(rmsnorm(x, weight, eps))
    ref = rmsnorm_ref(x, weight, eps)
    assert out.shape == x.shape and out.dtype == x.dtype
    assert jnp.allclose(out, ref, atol=1e-5, rtol=1e-5), "mismatch vs reference"

    # Ragged rows path (rows not a multiple of the tile) with a forced small
    # tile: rows = 20, tile = 8 -> grid = 3 with a partial last block.
    x2 = jax.random.normal(kx2, (2, 10, hidden), dtype=jnp.float32)
    out2 = jax.block_until_ready(rmsnorm(x2, weight, eps, tile_rows=8))
    ref2 = rmsnorm_ref(x2, weight, eps)
    assert jnp.allclose(out2, ref2, atol=1e-5, rtol=1e-5), "ragged-rows mismatch"

    # hidden not a multiple of 128: no pad/slice, full-extent lane block.
    hidden3 = 96
    x3 = jax.random.normal(kx3, (2, 8, hidden3), dtype=jnp.float32)
    w3 = 1.0 + 0.1 * jax.random.normal(kw3, (hidden3,), dtype=jnp.float32)
    out3 = jax.block_until_ready(rmsnorm(x3, w3, eps))
    ref3 = rmsnorm_ref(x3, w3, eps)
    assert jnp.allclose(out3, ref3, atol=1e-5, rtol=1e-5), "ragged-hidden mismatch"

    # bf16 path (16-sublane packing, cast-at-the-end semantics).
    xb = x.astype(jnp.bfloat16)
    outb = jax.block_until_ready(rmsnorm(xb, weight, eps))
    refb = rmsnorm_ref(xb, weight, eps)
    assert outb.dtype == jnp.bfloat16
    assert jnp.allclose(outb.astype(jnp.float32), refb.astype(jnp.float32),
                        atol=2e-2, rtol=2e-2), "bf16 mismatch"

    print("KERNEL_OK")
</pallas_src>

<mosaic_0001>
module attributes {stable_mosaic.version = 11 : i64} {
  func.func @_rmsnorm_kernel(%arg0: i32, %arg1: memref<16x256xf32, #tpu.memory_space<vmem>>, %arg2: memref<1x256xf32, #tpu.memory_space<vmem>>, %arg3: memref<16x256xf32, #tpu.memory_space<vmem>>) attributes {dimension_semantics = [#tpu.dimension_semantics<parallel>], iteration_bounds = array<i64: 1>, scalar_prefetch = 0 : i64, scratch_operands = 0 : i64, tpu.core_type = #tpu.core_type<tc>, window_params = [{transform_indices = @transform_0, window_bounds = array<i64: 16, 256>}, {pipeline_mode = #tpu.pipeline_mode<synchronous>, transform_indices = @transform_1, window_bounds = array<i64: 1, 256>}, {transform_indices = @transform_2, window_bounds = array<i64: 16, 256>}]} {
    %c0 = arith.constant 0 : index
    %c0_0 = arith.constant 0 : index
    %0 = vector.load %arg1[%c0, %c0_0] : memref<16x256xf32, #tpu.memory_space<vmem>>, vector<16x256xf32>
    %1 = arith.mulf %0, %0 : vector<16x256xf32>
    %cst = arith.constant dense<0.000000e+00> : vector<16xf32>
    %2 = vector.multi_reduction <add>, %1, %cst [1] : vector<16x256xf32> to vector<16xf32>
    %3 = vector.shape_cast %2 : vector<16xf32> to vector<16x1xf32>
    %cst_1 = arith.constant 3.906250e-03 : f32
    %4 = vector.broadcast %cst_1 : f32 to vector<16x1xf32>
    %5 = arith.mulf %3, %4 : vector<16x1xf32>
    %cst_2 = arith.constant 9.99999997E-7 : f32
    %6 = vector.broadcast %cst_2 : f32 to vector<16x1xf32>
    %7 = arith.addf %5, %6 : vector<16x1xf32>
    %8 = math.rsqrt %7 : vector<16x1xf32>
    %c0_3 = arith.constant 0 : index
    %c0_4 = arith.constant 0 : index
    %9 = vector.load %arg2[%c0_3, %c0_4] : memref<1x256xf32, #tpu.memory_space<vmem>>, vector<1x256xf32>
    %c0_5 = arith.constant 0 : index
    %c0_6 = arith.constant 0 : index
    %10 = vector.load %arg1[%c0_5, %c0_6] : memref<16x256xf32, #tpu.memory_space<vmem>>, vector<16x256xf32>
    %11 = vector.broadcast %8 : vector<16x1xf32> to vector<16x256xf32>
    %12 = arith.mulf %10, %11 : vector<16x256xf32>
    %13 = vector.broadcast %9 : vector<1x256xf32> to vector<16x256xf32>
    %14 = arith.mulf %13, %12 : vector<16x256xf32>
    %c0_7 = arith.constant 0 : index
    %c0_8 = arith.constant 0 : index
    %15 = vector.load %arg3[%c0_7, %c0_8] : memref<16x256xf32, #tpu.memory_space<vmem>>, vector<16x256xf32>
    tpu.vector_store %arg3[%c0_7, %c0_8], %14 {strides = array<i32>} : memref<16x256xf32, #tpu.memory_space<vmem>>, vector<16x256xf32>,
    return
  }
  func.func @transform_0(%arg0: i32) -> (i32, i32) {
    %c0_i32 = arith.constant 0 : i32
    %c0_i32_0 = arith.constant 0 : i32
    return %arg0, %c0_i32 : i32, i32
  }
  func.func @transform_1(%arg0: i32) -> (i32, i32) {
    %c0_i32 = arith.constant 0 : i32
    %c0_i32_0 = arith.constant 0 : i32
    %c0_i32_1 = arith.constant 0 : i32
    return %c0_i32, %c0_i32_0 : i32, i32
  }
  func.func @transform_2(%arg0: i32) -> (i32, i32) {
    %c0_i32 = arith.constant 0 : i32
    %c0_i32_0 = arith.constant 0 : i32
    return %arg0, %c0_i32 : i32, i32
  }
}

</mosaic_0001>

<llo_original>
// kernel: tpu_custom_call.1
$region0: #{tpu_custom_call.1}
  #allocation0 [shape = 'u32[]', space=smem, size = 0x4, offset = 0x4, fixed_abs, tag = 'smem constant byte address 0x4 - core index']
  #allocation1 [shape = 'u32[72,128]{1,0:T(1,128)}', space=vmem, size = 0x9000, scoped, tag = 'internal scratch']
  %s0 = inlined_call_operand.hbm [shape: f32[16,256], index: 0, kind: input, shape index: {}]
  %s1 = inlined_call_operand.hbm [shape: f32[1,256], index: 1, kind: input, shape index: {}]
  %s2 = inlined_call_operand.hbm [shape: f32[16,256], index: 2, kind: output, shape index: {}]
  %s3 = sld [smem:[#allocation0]]
  $region26: #{tpu_custom_call.1} parent=0
    _
  %s5 = ssub.s32 1, %s3
  %s6 = scalar_select 0, %s5, %s3
  $region1: #{tpu_custom_call.1} parent=0
    #allocation2 [shape = 'u8[16384]{0}', space=vmem, size = 0x4000, scoped, tag = 'input window, operand 0, single buffered']
    #allocation3 [shape = 's32[1]{0}', space=sflag, size = 0x4, scoped, tag = 'scoped memory for tpu_custom_call.1']
    #allocation4 [shape = 's32[1]{0}', space=sflag, size = 0x4, scoped, tag = 'scoped memory for tpu_custom_call.1']
    #allocation5 [shape = 'u8[1024]{0}', space=vmem, size = 0x400, scoped, tag = 'input window, operand 1, single buffered']
    #allocation6 [shape = 's32[1]{0}', space=sflag, size = 0x4, scoped, tag = 'scoped memory for tpu_custom_call.1']
    #allocation7 [shape = 'u8[16384]{0}', space=vmem, size = 0x4000, scoped, tag = 'output window, operand 0, single buffered']
    %7 = vsyncpa [#allocation3], 0
    %8 = vsyncpa [#allocation6], 0
    %9 = vsyncpa [#allocation4], 0
    // Predicated region
    $region2: #{tpu_custom_call.1} parent=1 // pred_check
      _
    $region3: #{tpu_custom_call.1} parent=1 // pred_check_branch
      %11 = sbr.rel (0) target = $region5
    $region4: #{tpu_custom_call.1} parent=1 // pred_region
      %13 = vsyncadd [#allocation3], 0
      %s14 = sshll.u32 %s0, 4
      %s15 = int_to_ptr.hbm [resolvable:$true] %s14
      %s16 = sshll.u32 [#allocation2], 4
      %s17 = int_to_ptr.vmem [resolvable:$true] %s16
      %22 = dma.hbm_to_vmem [thread:$0]  %s15, 512, %s17, [#allocation3], 256, 256, 16
    $region5: #{tpu_custom_call.1} parent=1 // pred_fallthru
      _
    // Predicated region
    $region6: #{tpu_custom_call.1} parent=1 // pred_check
      _
    $region7: #{tpu_custom_call.1} parent=1 // pred_check_branch
      %24 = sbr.rel (0) target = $region9
    $region8: #{tpu_custom_call.1} parent=1 // pred_region
      %26 = vsyncadd [#allocation6], 0
      %s28 = sshll.u32 %s1, 4
      %s29 = int_to_ptr.hbm [resolvable:$true] %s28
      %s30 = sshll.u32 [#allocation5], 4
      %s31 = int_to_ptr.vmem [resolvable:$true] %s30
      %33 = dma.hbm_to_vmem [thread:$0]  %s29, 32, %s31, [#allocation6]
    $region9: #{tpu_custom_call.1} parent=1 // pred_fallthru
      _
    // Predicated region
    $region10: #{tpu_custom_call.1} parent=1 // pred_check
      _
    $region11: #{tpu_custom_call.1} parent=1 // pred_check_branch
      %35 = sbr.rel (0) target = $region13
    $region12: #{tpu_custom_call.1} parent=1 // pred_region
      %37 = dma.done [#allocation3], 512
    $region13: #{tpu_custom_call.1} parent=1 // pred_fallthru
      _
    // Predicated region
    $region14: #{tpu_custom_call.1} parent=1 // pred_check
      _
    $region15: #{tpu_custom_call.1} parent=1 // pred_check_branch
      %39 = sbr.rel (0) target = $region17
    $region16: #{tpu_custom_call.1} parent=1 // pred_region
      %41 = dma.done [#allocation6], 32
    $region17: #{tpu_custom_call.1} parent=1 // pred_fallthru
      _
    %v42 = vld [vmem:[#allocation2] sm:$0xff]
    %v43 = vld [vmem:[#allocation2 + $0x8] sm:$0xff]
    %v44 = vld [vmem:[#allocation2 + $0x10] sm:$0xff]
    %v45 = vld [vmem:[#allocation2 + $0x18] sm:$0xff]
    %v46 = vmul.f32 %v42, %v42
    %v47 = vmul.f32 %v43, %v43
    %v48 = vmul.f32 %v44, %v44
    %v49 = vmul.f32 %v45, %v45
    %v50 = vadd.f32 %v46, %v47
    %51 = vadd.xlane.f32.xlu0 %v50
    %v52 = vpop.xlane.xlu0 %51
    %v53 = vadd.f32 %v48, %v49
    %54 = vadd.xlane.f32.xlu0 %v53
    %v55 = vpop.xlane.xlu0 %54
    %v56 = vmul.f32 %v52, 0.00390625
    %v57 = vmul.f32 %v55, 0.00390625
    %v58 = vadd.f32 %v56, 1e-06
    %v59 = vadd.f32 %v57, 1e-06
    %v60 = vrsqrt.pop %v58
    %v61 = vmul.f32 %v60, %v58
    %v62 = vmul.f32 %v61, %v60
    %v63 = vmul.f32 0.5, %v62
    %v64 = vsub.f32 1.5, %v63
    %v65 = vmul.f32 %v60, %v64
    %vm66 = vweird.f32 %v58
    %vm67 = vweird.f32 %v60
    %vm68 = vmor %vm66, %vm67
    %v69 = vsel %vm68, %v60, %v65
    %v70 = vrsqrt.pop %v59
    %v71 = vmul.f32 %v70, %v59
    %v72 = vmul.f32 %v71, %v70
    %v73 = vmul.f32 0.5, %v72
    %v74 = vsub.f32 1.5, %v73
    %v75 = vmul.f32 %v70, %v74
    %vm76 = vweird.f32 %v59
    %vm77 = vweird.f32 %v70
    %vm78 = vmor %vm76, %vm77
    %v79 = vsel %vm78, %v70, %v75
    %v80 = vld [vmem:[#allocation5] sm:$0x3]
    %v81 = vmul.f32 %v42, %v69
    %v82 = vmul.f32 %v43, %v69
    %v83 = vmul.f32 %v44, %v79
    %v84 = vmul.f32 %v45, %v79
    %v86 = vperm.slane %v80, 0
    %v87 = vperm.slane %v80, 1
    %v90 = vmul.f32 %v86, %v81
    %v91 = vmul.f32 %v87, %v82
    %v92 = vmul.f32 %v86, %v83
    %v93 = vmul.f32 %v87, %v84
    %94 = vst [vmem:[#allocation7] sm:$0xff] %v90
    %95 = vst [vmem:[#allocation7 + $0x8] sm:$0xff] %v91
    %96 = vst [vmem:[#allocation7 + $0x10] sm:$0xff] %v92
    %97 = vst [vmem:[#allocation7 + $0x18] sm:$0xff] %v93
    // Predicated region
    $region18: #{tpu_custom_call.1} parent=1 // pred_check
      _
    $region19: #{tpu_custom_call.1} parent=1 // pred_check_branch
      %99 = sbr.rel (0) target = $region21
    $region20: #{tpu_custom_call.1} parent=1 // pred_region
      %101 = vsyncadd [#allocation4], 0
      %s102 = sshll.u32 [#allocation7], 4
      %s103 = int_to_ptr.vmem [resolvable:$true] %s102
      %s104 = sshll.u32 %s2, 4
      %s105 = int_to_ptr.hbm [resolvable:$true] %s104
      %110 = dma.vmem_to_hbm [thread:$0]  %s103, 512, %s105, [#allocation4], 256, 256, 16
    $region21: #{tpu_custom_call.1} parent=1 // pred_fallthru
      _
    // Predicated region
    $region22: #{tpu_custom_call.1} parent=1 // pred_check
      _
    $region23: #{tpu_custom_call.1} parent=1 // pred_check_branch
      %112 = sbr.rel (0) target = $region25
    $region24: #{tpu_custom_call.1} parent=1 // pred_region
      %114 = dma.done [#allocation4], 512
    $region25: #{tpu_custom_call.1} parent=1 // pred_fallthru
      _
    %115 = vsyncpa [#allocation3], 1
    %116 = vsyncpa [#allocation6], 1
    %117 = vsyncpa [#allocation4], 1

</llo_original>
